<compile_context>
chip_gen: v6e
topology: v6e:2x2x1
jax: 0.10.0
libtpu: 0.0.40
codegen_flags: <defaults>
</compile_context>

<pallas_src>
import jax
import jax.numpy as jnp
from jax.experimental import pallas as pl
from jax.experimental.pallas import tpu as pltpu

N_AGENTS = 4
EMBED = 32
STATE_DIM = 32                       # int(np.prod(args.state_shape))
HYPER_OUT = N_AGENTS * EMBED         # 128 = hyper_w_1 output width
FUSED_OUT = 2 * HYPER_OUT            # 256 = [w1 | tiled w_final]
SEL_COLS = 8                         # 4 agent cols + 1 denom col + 3 zero pad


def _round_up(x, m):
    return ((x + m - 1) // m) * m


def qmix_kernel(states_ref, qs_ref, wcat_ref, bcat_ref, sel_ref, out_ref):
    """One row-tile of q_tot.

    states_ref : (TN, STATE_DIM)   f32 or bf16 rows of flattened states
    qs_ref     : (TN, N_AGENTS)    f32 rows of agent Q-values
    wcat_ref   : (STATE_DIM, 256)  [hyper_w_1 | tiled hyper_w_final] weights
    bcat_ref   : (1, 256)          matching biases (f32)
    sel_ref    : (128, 8)          cols 0..3: per-agent block sums,
                                   col 4: all-ones (denominator), 5..7: zero
    out_ref    : (TN, 1)           q_tot rows
    """
    s = states_ref[...]                                        # (TN, D)
    qs = qs_ref[...]                                           # (TN, A)

    # Single fused hypernetwork matmul + one abs/bias pass (MXU, f32 accum).
    h = jnp.abs(
        jnp.dot(s, wcat_ref[...], preferred_element_type=jnp.float32)
        + bcat_ref[...]
    )                                                          # (TN, 256)

    # prod[:, a*E+e] = |w1|[:, a*E+e] * |w_final|[:, e]; both slices are
    # 128-lane aligned, so this is a pure VPU multiply (no relayout).
    prod = h[:, :HYPER_OUT] * h[:, HYPER_OUT:]                 # (TN, 128)

    # One small MXU matmul yields per-agent k (cols 0..3) AND the agent-sum
    # denominator (col 4) -- no cross-lane reduction needed for the denom.
    k_aug = jnp.dot(prod, sel_ref[...],
                    preferred_element_type=jnp.float32)        # (TN, 8)
    k = k_aug[:, :N_AGENTS]                                    # (TN, 4)
    den = k_aug[:, N_AGENTS:N_AGENTS + 1]                      # (TN, 1)

    # q_tot = bmm(agent_qs, k / sum_a k) == (sum_a qs*k) / (sum_a k).
    # Exact division to match the PyTorch module (zero-padded tail rows may
    # divide by a tiny denominator; they are sliced off in the wrapper).
    num = jnp.sum(qs * k, axis=-1, keepdims=True)              # (TN, 1)
    out_ref[...] = num / den


def qmix_forward(agent_qs, states, params, *, tile_rows=2048,
                 stream_bf16=False):
    """agent_qs: (bs, T, n_agents); states: (bs, T, state_dim) -> (bs, T, 1).

    tile_rows:   rows of bs*T processed per grid step.  2048 keeps the
                 double-buffered lane-padded tiles (~5 MiB) inside v5e's
                 16 MiB scoped-VMEM default; raise vmem_limit_bytes before
                 going past 2048 on v5e / v7x.
    stream_bf16: cast states and the fused hypernet weights to bf16 at the
                 pallas_call boundary (MXU still accumulates in f32).  Halves
                 the dominant HBM stream for the memory-bound large-N regime
                 at a small accuracy cost vs the f32 PyTorch module.
    """
    bs, T, A = agent_qs.shape
    assert A == N_AGENTS
    assert states.shape[-1] == STATE_DIM
    N = bs * T

    in_dtype = jnp.bfloat16 if stream_bf16 else jnp.float32
    states_f = states.reshape(N, STATE_DIM).astype(in_dtype)
    qs_f = agent_qs.reshape(N, A).astype(jnp.float32)

    # Row tile: multiple of 16 (sublane granule for both f32 and packed bf16).
    TN = min(tile_rows, _round_up(N, 16))
    N_pad = _round_up(N, TN)
    if N_pad != N:
        # Padded rows are harmless and sliced off below.
        states_f = jnp.pad(states_f, ((0, N_pad - N), (0, 0)))
        qs_f = jnp.pad(qs_f, ((0, N_pad - N), (0, 0)))

    # Fold the "replicate w_final across agents" copy into the weights at
    # trace time and fuse with hyper_w_1: (32, 256) weight, (1, 256) bias.
    wcat = jnp.concatenate(
        [params["w1"], jnp.tile(params["wf"], (1, N_AGENTS))], axis=1)
    bcat = jnp.concatenate(
        [params["b1"], jnp.tile(params["bf"], (1, N_AGENTS))], axis=1)
    wcat = wcat.astype(in_dtype)
    bcat = bcat.astype(jnp.float32)

    # Augmented selector: cols 0..3 sum each agent's 32-wide block,
    # col 4 is all ones (agent-sum denominator), cols 5..7 are zero padding.
    sel = jnp.concatenate(
        [jnp.kron(jnp.eye(N_AGENTS, dtype=jnp.float32),
                  jnp.ones((EMBED, 1), jnp.float32)),            # (128, 4)
         jnp.ones((HYPER_OUT, 1), jnp.float32),                  # (128, 1)
         jnp.zeros((HYPER_OUT, SEL_COLS - N_AGENTS - 1), jnp.float32)],
        axis=1)                                                  # (128, 8)

    grid = (N_pad // TN,)
    inv = lambda a: pl.BlockSpec(a.shape, lambda i: (0, 0))      # grid-invariant

    out = pl.pallas_call(
        qmix_kernel,
        out_shape=jax.ShapeDtypeStruct((N_pad, 1), jnp.float32),
        grid=grid,
        in_specs=[
            pl.BlockSpec((TN, STATE_DIM), lambda i: (i, 0)),     # states rows
            pl.BlockSpec((TN, N_AGENTS), lambda i: (i, 0)),      # agent_qs rows
            inv(wcat), inv(bcat), inv(sel),
        ],
        # Column output kept for guaranteed lowering; see header TODO on the
        # lane-dense (1, TN) layout.
        out_specs=pl.BlockSpec((TN, 1), lambda i: (i, 0)),
        compiler_params=pltpu.CompilerParams(
            dimension_semantics=("parallel",)),
    )(states_f, qs_f, wcat, bcat, sel)

    return out[:N].reshape(bs, T, 1)


def qmix_ref(agent_qs, states, p):
    """Pure-JAX f32 reference mirroring the PyTorch forward exactly."""
    bs, T, A = agent_qs.shape
    s = states.reshape(-1, STATE_DIM)
    qs = agent_qs.reshape(-1, 1, A)
    w1 = jnp.abs(s @ p["w1"] + p["b1"]).reshape(-1, A, EMBED)
    wf = jnp.abs(s @ p["wf"] + p["bf"]).reshape(-1, EMBED, 1)
    k = jnp.matmul(w1, wf)                        # (N, A, 1)
    k = k / jnp.sum(k, axis=1, keepdims=True)
    y = jnp.matmul(qs, k)                         # (N, 1, 1)
    return y.reshape(bs, -1, 1)


def init_params(key):
    """Deterministic init mimicking nn.Linear (uniform +-1/sqrt(fan_in))."""
    ks = jax.random.split(key, 10)
    bound = 1.0 / jnp.sqrt(jnp.float32(STATE_DIM))
    bound_e = 1.0 / jnp.sqrt(jnp.float32(EMBED))
    u = lambda k, shape, b: jax.random.uniform(k, shape, jnp.float32, -b, b)
    return {
        # hyper_w_1: Linear(state_dim, embed*n_agents)
        "w1": u(ks[0], (STATE_DIM, N_AGENTS * EMBED), bound),
        "b1": u(ks[1], (1, N_AGENTS * EMBED), bound),
        # hyper_w_final: Linear(state_dim, embed)
        "wf": u(ks[2], (STATE_DIM, EMBED), bound),
        "bf": u(ks[3], (1, EMBED), bound),
        # hyper_b_1 and V exist in __init__ but do not affect forward()'s q_tot
        "hb1_w": u(ks[4], (STATE_DIM, EMBED), bound),
        "hb1_b": u(ks[5], (1, EMBED), bound),
        "v1_w": u(ks[6], (STATE_DIM, EMBED), bound),
        "v1_b": u(ks[7], (1, EMBED), bound),
        "v2_w": u(ks[8], (EMBED, 1), bound_e),
        "v2_b": u(ks[9], (1, 1), bound_e),
    }


if __name__ == "__main__":
    key = jax.random.PRNGKey(0)
    k_p, k_q, k_s = jax.random.split(key, 3)

    params = init_params(k_p)

    bs, T = 2, 8
    agent_qs = jax.random.normal(k_q, (bs, T, N_AGENTS), jnp.float32)
    states = jax.random.normal(k_s, (bs, T, STATE_DIM), jnp.float32)

    q_ref = qmix_ref(agent_qs, states, params)

    # Exact f32 streaming path (tolerance covers MXU f32 matmul pass
    # differences between the XLA reference and the Mosaic kernel).
    q_tot = jax.block_until_ready(qmix_forward(agent_qs, states, params))
    assert q_tot.shape == (bs, T, 1)
    assert jnp.allclose(q_tot, q_ref, atol=2e-3, rtol=2e-3), (
        f"f32 mismatch: max abs err {jnp.max(jnp.abs(q_tot - q_ref))}")

    # bf16-streaming path (for the HBM-bound large-N regime); looser tolerance.
    q_bf16 = jax.block_until_ready(
        qmix_forward(agent_qs, states, params, stream_bf16=True))
    assert jnp.allclose(q_bf16, q_ref, atol=5e-2, rtol=5e-2), (
        f"bf16 mismatch: max abs err {jnp.max(jnp.abs(q_bf16 - q_ref))}")

    print("KERNEL_OK")
</pallas_src>

<mosaic_0001>
module attributes {stable_mosaic.version = 11 : i64} {
  func.func @qmix_kernel(%arg0: i32, %arg1: memref<16x32xf32, #tpu.memory_space<vmem>>, %arg2: memref<16x4xf32, #tpu.memory_space<vmem>>, %arg3: memref<32x256xf32, #tpu.memory_space<vmem>>, %arg4: memref<1x256xf32, #tpu.memory_space<vmem>>, %arg5: memref<128x8xf32, #tpu.memory_space<vmem>>, %arg6: memref<16x1xf32, #tpu.memory_space<vmem>>) attributes {dimension_semantics = [#tpu.dimension_semantics<parallel>], iteration_bounds = array<i64: 1>, scalar_prefetch = 0 : i64, scratch_operands = 0 : i64, tpu.core_type = #tpu.core_type<tc>, window_params = [{transform_indices = @transform_0, window_bounds = array<i64: 16, 32>}, {transform_indices = @transform_1, window_bounds = array<i64: 16, 4>}, {pipeline_mode = #tpu.pipeline_mode<synchronous>, transform_indices = @transform_2, window_bounds = array<i64: 32, 256>}, {pipeline_mode = #tpu.pipeline_mode<synchronous>, transform_indices = @transform_3, window_bounds = array<i64: 1, 256>}, {pipeline_mode = #tpu.pipeline_mode<synchronous>, transform_indices = @transform_4, window_bounds = array<i64: 128, 8>}, {transform_indices = @transform_5, window_bounds = array<i64: 16, 1>}]} {
    %c0 = arith.constant 0 : index
    %c0_0 = arith.constant 0 : index
    %0 = vector.load %arg1[%c0, %c0_0] : memref<16x32xf32, #tpu.memory_space<vmem>>, vector<16x32xf32>
    %c0_1 = arith.constant 0 : index
    %c0_2 = arith.constant 0 : index
    %1 = vector.load %arg2[%c0_1, %c0_2] : memref<16x4xf32, #tpu.memory_space<vmem>>, vector<16x4xf32>
    %c0_3 = arith.constant 0 : index
    %c0_4 = arith.constant 0 : index
    %2 = vector.load %arg3[%c0_3, %c0_4] : memref<32x256xf32, #tpu.memory_space<vmem>>, vector<32x256xf32>
    %cst = arith.constant dense<0.000000e+00> : vector<16x256xf32>
    %3 = tpu.matmul %0, %2, %cst {dimension_numbers = #tpu.dot_dimension_numbers<[1], [0], [0], [1], [0, 0, 1, 1], [], []>} : vector<16x32xf32>, vector<32x256xf32>, vector<16x256xf32> -> vector<16x256xf32>
    %c0_5 = arith.constant 0 : index
    %c0_6 = arith.constant 0 : index
    %4 = vector.load %arg4[%c0_5, %c0_6] : memref<1x256xf32, #tpu.memory_space<vmem>>, vector<1x256xf32>
    %5 = vector.broadcast %4 : vector<1x256xf32> to vector<16x256xf32>
    %6 = arith.addf %3, %5 : vector<16x256xf32>
    %7 = math.absf %6 : vector<16x256xf32>
    %8 = vector.extract_strided_slice %7 {offsets = [0, 0], sizes = [16, 128], strides = [1, 1]} : vector<16x256xf32> to vector<16x128xf32>
    %9 = vector.extract_strided_slice %7 {offsets = [0, 128], sizes = [16, 128], strides = [1, 1]} : vector<16x256xf32> to vector<16x128xf32>
    %10 = arith.mulf %8, %9 : vector<16x128xf32>
    %c0_7 = arith.constant 0 : index
    %c0_8 = arith.constant 0 : index
    %11 = vector.load %arg5[%c0_7, %c0_8] : memref<128x8xf32, #tpu.memory_space<vmem>>, vector<128x8xf32>
    %cst_9 = arith.constant dense<0.000000e+00> : vector<16x8xf32>
    %12 = tpu.matmul %10, %11, %cst_9 {dimension_numbers = #tpu.dot_dimension_numbers<[1], [0], [0], [1], [0, 0, 1, 1], [], []>} : vector<16x128xf32>, vector<128x8xf32>, vector<16x8xf32> -> vector<16x8xf32>
    %13 = vector.extract_strided_slice %12 {offsets = [0, 0], sizes = [16, 4], strides = [1, 1]} : vector<16x8xf32> to vector<16x4xf32>
    %14 = vector.extract_strided_slice %12 {offsets = [0, 4], sizes = [16, 1], strides = [1, 1]} : vector<16x8xf32> to vector<16x1xf32>
    %15 = arith.mulf %1, %13 : vector<16x4xf32>
    %cst_10 = arith.constant dense<0.000000e+00> : vector<16xf32>
    %16 = vector.multi_reduction <add>, %15, %cst_10 [1] : vector<16x4xf32> to vector<16xf32>
    %17 = vector.shape_cast %16 : vector<16xf32> to vector<16x1xf32>
    %18 = arith.divf %17, %14 : vector<16x1xf32>
    %c0_11 = arith.constant 0 : index
    %c0_12 = arith.constant 0 : index
    %19 = vector.load %arg6[%c0_11, %c0_12] : memref<16x1xf32, #tpu.memory_space<vmem>>, vector<16x1xf32>
    tpu.vector_store %arg6[%c0_11, %c0_12], %18 {strides = array<i32>} : memref<16x1xf32, #tpu.memory_space<vmem>>, vector<16x1xf32>,
    return
  }
  func.func @transform_0(%arg0: i32) -> (i32, i32) {
    %c0_i32 = arith.constant 0 : i32
    %c0_i32_0 = arith.constant 0 : i32
    return %arg0, %c0_i32 : i32, i32
  }
  func.func @transform_1(%arg0: i32) -> (i32, i32) {
    %c0_i32 = arith.constant 0 : i32
    %c0_i32_0 = arith.constant 0 : i32
    return %arg0, %c0_i32 : i32, i32
  }
  func.func @transform_2(%arg0: i32) -> (i32, i32) {
    %c0_i32 = arith.constant 0 : i32
    %c0_i32_0 = arith.constant 0 : i32
    %c0_i32_1 = arith.constant 0 : i32
    return %c0_i32, %c0_i32_0 : i32, i32
  }
  func.func @transform_3(%arg0: i32) -> (i32, i32) {
    %c0_i32 = arith.constant 0 : i32
    %c0_i32_0 = arith.constant 0 : i32
    %c0_i32_1 = arith.constant 0 : i32
    return %c0_i32, %c0_i32_0 : i32, i32
  }
  func.func @transform_4(%arg0: i32) -> (i32, i32) {
    %c0_i32 = arith.constant 0 : i32
    %c0_i32_0 = arith.constant 0 : i32
    %c0_i32_1 = arith.constant 0 : i32
    return %c0_i32, %c0_i32_0 : i32, i32
  }
  func.func @transform_5(%arg0: i32) -> (i32, i32) {
    %c0_i32 = arith.constant 0 : i32
    %c0_i32_0 = arith.constant 0 : i32
    return %arg0, %c0_i32 : i32, i32
  }
}

</mosaic_0001>

<llo_original>
// kernel: tpu_custom_call.1
$region0: #{tpu_custom_call.1}
  #allocation0 [shape = 'u32[]', space=smem, size = 0x4, offset = 0x4, fixed_abs, tag = 'smem constant byte address 0x4 - core index']
  #allocation1 [shape = 'u32[144,128]{1,0:T(1,128)}', space=vmem, size = 0x12000, scoped, tag = 'internal scratch']
  %s0 = inlined_call_operand.vmem [shape: f32[16,32], index: 0, kind: input, shape index: {}]
  %s1 = inlined_call_operand.vmem [shape: f32[16,4], index: 1, kind: input, shape index: {}]
  %s2 = inlined_call_operand.vmem [shape: f32[32,256], index: 2, kind: input, shape index: {}]
  %s3 = inlined_call_operand.vmem [shape: f32[1,256], index: 3, kind: input, shape index: {}]
  %s4 = inlined_call_operand.vmem [shape: f32[128,8], index: 4, kind: input, shape index: {}]
  %s5 = inlined_call_operand.vmem [shape: f32[16,1], index: 5, kind: output, shape index: {}]
  %s6 = sld [smem:[#allocation0]]
  $region30: #{tpu_custom_call.1} parent=0
    _
  %s8 = ssub.s32 1, %s6
  %s9 = scalar_select 0, %s8, %s6
  // Predicated region
  $region2: #{tpu_custom_call.1} parent=0 // pred_check
    _
  $region3: #{tpu_custom_call.1} parent=0 // pred_check_branch
    %11 = sbr.rel (0) target = $region5
  $region4: #{tpu_custom_call.1} parent=0 // pred_region
    _
  $region5: #{tpu_custom_call.1} parent=0 // pred_fallthru
    _
  // Predicated region
  $region6: #{tpu_custom_call.1} parent=0 // pred_check
    _
  $region7: #{tpu_custom_call.1} parent=0 // pred_check_branch
    %13 = sbr.rel (0) target = $region9
  $region8: #{tpu_custom_call.1} parent=0 // pred_region
    _
  $region9: #{tpu_custom_call.1} parent=0 // pred_fallthru
    _
  // Predicated region
  $region10: #{tpu_custom_call.1} parent=0 // pred_check
    _
  $region11: #{tpu_custom_call.1} parent=0 // pred_check_branch
    %15 = sbr.rel (0) target = $region13
  $region12: #{tpu_custom_call.1} parent=0 // pred_region
    _
  $region13: #{tpu_custom_call.1} parent=0 // pred_fallthru
    _
  // Predicated region
  $region14: #{tpu_custom_call.1} parent=0 // pred_check
    _
  $region15: #{tpu_custom_call.1} parent=0 // pred_check_branch
    %17 = sbr.rel (0) target = $region17
  $region16: #{tpu_custom_call.1} parent=0 // pred_region
    _
  $region17: #{tpu_custom_call.1} parent=0 // pred_fallthru
    _
  // Predicated region
  $region18: #{tpu_custom_call.1} parent=0 // pred_check
    _
  $region19: #{tpu_custom_call.1} parent=0 // pred_check_branch
    %19 = sbr.rel (0) target = $region21
  $region20: #{tpu_custom_call.1} parent=0 // pred_region
    _
  $region21: #{tpu_custom_call.1} parent=0 // pred_fallthru
    _
  %v20 = vld [vmem:[%s0] sm:$0xff]
  %v21 = vld [vmem:[%s0 + $0x8] sm:$0xff]
  %v22 = vld [vmem:[%s1] sm:$0xff]
  %v23 = vld [vmem:[%s1 + $0x8] sm:$0xff]
  %v24 = vld [vmem:[%s2] sm:$0xff]
  %v25 = vld [vmem:[%s2 + $0x8] sm:$0xff]
  %v26 = vld [vmem:[%s2 + $0x10] sm:$0xff]
  %v27 = vld [vmem:[%s2 + $0x18] sm:$0xff]
  %v28 = vld [vmem:[%s2 + $0x20] sm:$0xff]
  %v29 = vld [vmem:[%s2 + $0x28] sm:$0xff]
  %v30 = vld [vmem:[%s2 + $0x30] sm:$0xff]
  %v31 = vld [vmem:[%s2 + $0x38] sm:$0xff]
  %v32 = vld [vmem:[%s3] sm:$0x3]
  %v34 = vlaneseq
  %v35 = vshrl.u32 %v34, 7
  %v36 = vsub.s32 0, %v35
  %v37 = vrot.slane %v32, %v36
  %v38 = vlaneseq
  %v39 = vshrl.u32 %v38, 7
  %v40 = vsub.s32 1, %v39
  %v41 = vrot.slane %v32, %v40
  %vm44 = vcmask 261120
  %v46 = vsel %vm44, %v20, 0
  %v49 = vsel %vm44, %v21, 0
  %51 = vmatprep.subr.mxu0 0.0
  %52 = vmatpush1.msra.mxu0 0.0
  %53 = vmatprep.subr.mxu0 0.0
  %54 = vmatpush1.msra.mxu0 0.0
  %55 = vmatprep.subr.mxu0 0.0
  %56 = vmatpush1.msra.mxu0 0.0
  %57 = vmatprep.subr.mxu0 0.0
  %58 = vmatpush1.msra.mxu0 0.0
  %59 = vmatprep.subr.mxu0 0.0
  %60 = vmatpush1.msra.mxu0 0.0
  %61 = vmatprep.subr.mxu0 0.0
  %62 = vmatpush1.msra.mxu0 0.0
  %63 = vmatprep.subr.mxu0 0.0
  %64 = vmatpush1.msra.mxu0 0.0
  %65 = vmatprep.subr.mxu0 0.0
  %66 = vmatpush1.msra.mxu0 0.0
  %67 = vmatprep.subr.mxu0 0.0
  %68 = vmatpush1.msra.mxu0 0.0
  %69 = vmatprep.subr.mxu0 0.0
  %70 = vmatpush1.msra.mxu0 0.0
  %71 = vmatprep.subr.mxu0 0.0
  %72 = vmatpush1.msra.mxu0 0.0
  %73 = vmatprep.subr.mxu0 0.0
  %74 = vmatpush1.msra.mxu0 0.0
  %75 = vmatprep.subr.mxu0 %v31
  %76 = vmatpush1.msra.mxu0 %v30
  %77 = vmatprep.subr.mxu0 %v29
  %78 = vmatpush1.msra.mxu0 %v28
  %79 = vmatprep.subr.mxu0 %v27
  %80 = vmatpush1.msra.mxu0 %v26
  %81 = vmatprep.subr.mxu0 %v25
  %82 = vmatpush1.msra.mxu0 %v24
  %83 = vmatprep.subr.mxu0 0.0
  %84 = vmatpush2.msra.mxu0 0.0
  %85 = vmatprep.subr.mxu0 0.0
  %86 = vmatpush2.msra.mxu0 0.0
  %87 = vmatprep.subr.mxu0 0.0
  %88 = vmatpush2.msra.mxu0 0.0
  %89 = vmatprep.subr.mxu0 0.0
  %90 = vmatpush2.msra.mxu0 0.0
  %91 = vmatprep.subr.mxu0 0.0
  %92 = vmatpush2.msra.mxu0 0.0
  %93 = vmatprep.subr.mxu0 0.0
  %94 = vmatpush2.msra.mxu0 0.0
  %95 = vmatprep.subr.mxu0 0.0
  %96 = vmatpush2.msra.mxu0 0.0
  %97 = vmatprep.subr.mxu0 0.0
  %98 = vmatpush2.msra.mxu0 0.0
  %99 = vmatprep.subr.mxu0 0.0
  %100 = vmatpush2.msra.mxu0 0.0
  %101 = vmatprep.subr.mxu0 0.0
  %102 = vmatpush2.msra.mxu0 0.0
  %103 = vmatprep.subr.mxu0 0.0
  %104 = vmatpush2.msra.mxu0 0.0
  %105 = vmatprep.subr.mxu0 0.0
  %106 = vmatpush2.msra.mxu0 0.0
  %107 = vmatprep.subr.mxu0 0.0
  %108 = vmatpush2.msra.mxu0 0.0
  %109 = vmatprep.subr.mxu0 0.0
  %110 = vmatpush2.msra.mxu0 0.0
  %111 = vmatprep.subr.mxu0 0.0
  %112 = vmatpush2.msra.mxu0 0.0
  %113 = vmatprep.subr.mxu0 0.0
  %114 = vmatpush2.msra.mxu0 0.0
  %115 = vmatprep.mubr.f32.mxu0 0.0
  %116 = vmatmul.mubr.f32.gmra.mxu0 %v46
  %v117 = vpop.f32.mrf.mxu0
  %v118 = vadd.f32 %v37, %v117
  %v119 = vpop.f32.mrf.mxu0
  %v120 = vadd.f32 %v41, %v119
  %121 = vmatprep.mubr.f32.mxu0 0.0
  %122 = vmatmul.mubr.f32.gmra.mxu0 %v49
  %v123 = vpop.f32.mrf.mxu0
  %v124 = vadd.f32 %v37, %v123
  %v125 = vpop.f32.mrf.mxu0
  %v126 = vadd.f32 %v41, %v125
  %127 = vdwg.mxu0
  %v128 = vand.u32 2147483647, %v118
  %v129 = vand.u32 2147483647, %v120
  %v130 = vand.u32 2147483647, %v124
  %v131 = vand.u32 2147483647, %v126
  %v132 = vmul.f32 %v128, %v129
  %v133 = vmul.f32 %v130, %v131
  %v134 = vld [vmem:[%s4] sm:$0xff]
  %v135 = vld [vmem:[%s4 + $0x8] sm:$0xff]
  %v136 = vld [vmem:[%s4 + $0x10] sm:$0xff]
  %v137 = vld [vmem:[%s4 + $0x18] sm:$0xff]
  %v138 = vld [vmem:[%s4 + $0x20] sm:$0xff]
  %v139 = vld [vmem:[%s4 + $0x28] sm:$0xff]
  %v140 = vld [vmem:[%s4 + $0x30] sm:$0xff]
  %v141 = vld [vmem:[%s4 + $0x38] sm:$0xff]
  %v142 = vld [vmem:[%s4 + $0x40] sm:$0xff]
  %v143 = vld [vmem:[%s4 + $0x48] sm:$0xff]
  %v144 = vld [vmem:[%s4 + $0x50] sm:$0xff]
  %v145 = vld [vmem:[%s4 + $0x58] sm:$0xff]
  %v146 = vld [vmem:[%s4 + $0x60] sm:$0xff]
  %v147 = vld [vmem:[%s4 + $0x68] sm:$0xff]
  %v148 = vld [vmem:[%s4 + $0x70] sm:$0xff]
  %v149 = vld [vmem:[%s4 + $0x78] sm:$0xff]
  %150 = vmatprep.subr.mxu0 0.0
  %151 = vmatpush1.msra.mxu0 %v149
  %152 = vmatprep.subr.mxu0 0.0
  %153 = vmatpush1.msra.mxu0 %v148
  %154 = vmatprep.subr.mxu0 0.0
  %155 = vmatpush1.msra.mxu0 %v147
  %156 = vmatprep.subr.mxu0 0.0
  %157 = vmatpush1.msra.mxu0 %v146
  %158 = vmatprep.subr.mxu0 0.0
  %159 = vmatpush1.msra.mxu0 %v145
  %160 = vmatprep.subr.mxu0 0.0
  %161 = vmatpush1.msra.mxu0 %v144
  %162 = vmatprep.subr.mxu0 0.0
  %163 = vmatpush1.msra.mxu0 %v143
  %164 = vmatprep.subr.mxu0 0.0
  %165 = vmatpush1.msra.mxu0 %v142
  %166 = vmatprep.subr.mxu0 0.0
  %167 = vmatpush1.msra.mxu0 %v141
  %168 = vmatprep.subr.mxu0 0.0
  %169 = vmatpush1.msra.mxu0 %v140
  %170 = vmatprep.subr.mxu0 0.0
  %171 = vmatpush1.msra.mxu0 %v139
  %172 = vmatprep.subr.mxu0 0.0
  %173 = vmatpush1.msra.mxu0 %v138
  %174 = vmatprep.subr.mxu0 0.0
  %175 = vmatpush1.msra.mxu0 %v137
  %176 = vmatprep.subr.mxu0 0.0
  %177 = vmatpush1.msra.mxu0 %v136
  %178 = vmatprep.subr.mxu0 0.0
  %179 = vmatpush1.msra.mxu0 %v135
  %180 = vmatprep.subr.mxu0 0.0
  %181 = vmatpush1.msra.mxu0 %v134
  %182 = vmatprep.subr.mxu0 0.0
  %183 = vmatpush2.msra.mxu0 0.0
  %184 = vmatprep.subr.mxu0 0.0
  %185 = vmatpush2.msra.mxu0 0.0
  %186 = vmatprep.subr.mxu0 0.0
  %187 = vmatpush2.msra.mxu0 0.0
  %188 = vmatprep.subr.mxu0 0.0
  %189 = vmatpush2.msra.mxu0 0.0
  %190 = vmatprep.subr.mxu0 0.0
  %191 = vmatpush2.msra.mxu0 0.0
  %192 = vmatprep.subr.mxu0 0.0
  %193 = vmatpush2.msra.mxu0 0.0
  %194 = vmatprep.subr.mxu0 0.0
  %195 = vmatpush2.msra.mxu0 0.0
  %196 = vmatprep.subr.mxu0 0.0
  %197 = vmatpush2.msra.mxu0 0.0
  %198 = vmatprep.subr.mxu0 0.0
  %199 = vmatpush2.msra.mxu0 0.0
  %200 = vmatprep.subr.mxu0 0.0
  %201 = vmatpush2.msra.mxu0 0.0
  %202 = vmatprep.subr.mxu0 0.0
  %203 = vmatpush2.msra.mxu0 0.0
  %204 = vmatprep.subr.mxu0 0.0
  %205 = vmatpush2.msra.mxu0 0.0
  %206 = vmatprep.subr.mxu0 0.0
  %207 = vmatpush2.msra.mxu0 0.0
  %208 = vmatprep.subr.mxu0 0.0
  %209 = vmatpush2.msra.mxu0 0.0
  %210 = vmatprep.subr.mxu0 0.0
  %211 = vmatpush2.msra.mxu0 0.0
  %212 = vmatprep.subr.mxu0 0.0
  %213 = vmatpush2.msra.mxu0 0.0
  %214 = vmatprep.mubr.f32.mxu0 0.0
  %215 = vmatmul.mubr.f32.gmra.mxu0 %v132
  %v216 = vpop.f32.mrf.mxu0
  %v217 = vadd.f32 0.0, %v216
  %v218 = vpop.f32.mrf.mxu0
  %219 = vmatprep.mubr.f32.mxu0 0.0
  %220 = vmatmul.mubr.f32.gmra.mxu0 %v133
  %v221 = vpop.f32.mrf.mxu0
  %v222 = vadd.f32 0.0, %v221
  %v223 = vpop.f32.mrf.mxu0
  %224 = vdwg.mxu0
  %v225 = vmul.f32 %v22, %v217
  %v226 = vmul.f32 %v23, %v222
  %vm227 = vcmask 31744
  %v228 = vsel %vm227, %v225, 0.0
  %229 = vadd.xlane.f32.xlu0 %v228
  %v230 = vpop.xlane.xlu0 %229
  %v231 = vsel %vm227, %v226, 0.0
  %232 = vadd.xlane.f32.xlu0 %v231
  %v233 = vpop.xlane.xlu0 %232
  %v234 = vrcp.pop %v217
  %v235 = vmul.f32 %v230, %v234
  %v236 = vrcp.pop %v222
  %v237 = vmul.f32 %v233, %v236
  %240 = vrot.lane.b32.xlu0 %v235, 124
  %v241 = vpop.permute.xlu0 %240
  %242 = vrot.lane.b32.xlu0 %v237, 124
  %v243 = vpop.permute.xlu0 %242
  %vm246 = vcmask 7168
  %247 = vst.msk [vmem:[%s5] sm:$0xff] %vm246, %v241
  %248 = vst.msk [vmem:[%s5 + $0x8] sm:$0xff] %vm246, %v243
  // Predicated region
  $region22: #{tpu_custom_call.1} parent=0 // pred_check
    _
  $region23: #{tpu_custom_call.1} parent=0 // pred_check_branch
    %250 = sbr.rel (0) target = $region25
  $region24: #{tpu_custom_call.1} parent=0 // pred_region
    _
  $region25: #{tpu_custom_call.1} parent=0 // pred_fallthru
    _
  // Predicated region
  $region26: #{tpu_custom_call.1} parent=0 // pred_check
    _
  $region27: #{tpu_custom_call.1} parent=0 // pred_check_branch
    %252 = sbr.rel (0) target = $region29
  $region28: #{tpu_custom_call.1} parent=0 // pred_region
    _
  $region29: #{tpu_custom_call.1} parent=0 // pred_fallthru
    _

</llo_original>
